<compile_context>
chip_gen: v6e
topology: v6e:2x2x1
jax: 0.10.0
libtpu: 0.0.40
codegen_flags: <defaults>
</compile_context>

<pallas_src>
import functools

import jax
import jax.numpy as jnp
from jax.experimental import pallas as pl
from jax.experimental.pallas import tpu as pltpu

# Module hyper-parameters (from vq_vae.py defaults).
NUM_HIDDENS = 64            # in_channels == num_hiddens (residual stream width)
NUM_RESIDUAL_HIDDENS = 32
NUM_RESIDUAL_LAYERS = 2


def residual_stack_kernel(x_ref, w3_ref, w1_ref, o_ref, *, num_layers, res_hiddens):
    """One grid step = one batch chunk.

    x_ref : (Bt, L, C)  f32 activations (channels-last)
    w3_ref: (num_layers, C, 3*R) bf16 N-side fused 3-tap conv weights [W0|W1|W2]
    w1_ref: (num_layers, R, C)   bf16 1x1 conv weights
    o_ref : (Bt, L, C)
    """
    blk_b, L, C = x_ref.shape
    M = blk_b * L
    R = res_hiddens

    # Residual stream in f32, flattened to (M, C) rows for the matmuls.
    x = x_ref[...].reshape(M, C).astype(jnp.float32)

    # Per-row halo masks, (M, 1): within each batch element row 0 has no
    # "previous" tap and row L-1 has no "next" tap; the same masks zero the
    # roll wrap-around across batch-element (and block) boundaries.
    pos = jax.lax.broadcasted_iota(jnp.int32, (M, 1), 0) % L
    is_first = pos == 0
    is_last = pos == (L - 1)

    for layer in range(num_layers):          # unrolled: distinct weights per layer
        # ReLU then cast to bf16 before the matmul (no f32 relayouts downstream).
        h = jnp.maximum(x, 0.0).astype(jnp.bfloat16)

        # N-side fused k=3 conv: one (M, C) @ (C, 3R) matmul, f32 accumulate.
        p = jnp.dot(h, w3_ref[layer], preferred_element_type=jnp.float32)
        p0 = p[:, :R]            # h[l] @ W_tap0  -> contributes to out[l+1]
        p1 = p[:, R:2 * R]       # h[l] @ W_tap1  -> contributes to out[l]
        p2 = p[:, 2 * R:]        # h[l] @ W_tap2  -> contributes to out[l-1]

        # out[l] = p0[l-1] + p1[l] + p2[l+1]; XLU rolls on (M, R) + zero masks.
        r = (jnp.where(is_first, 0.0, pltpu.roll(p0, shift=1, axis=0))
             + p1
             + jnp.where(is_last, 0.0, pltpu.roll(p2, shift=M - 1, axis=0)))

        # ReLU then k=1 conv: (M, R) @ (R, C).
        r = jnp.maximum(r, 0.0).astype(jnp.bfloat16)
        y = jnp.dot(r, w1_ref[layer], preferred_element_type=jnp.float32)

        x = x + y                            # residual add in f32

    o_ref[...] = jnp.maximum(x, 0.0).reshape(blk_b, L, C).astype(o_ref.dtype)


def _pick_batch_block(B, L, C, target_block_bytes=1 << 20):
    """Size-aware block heuristic.

    Prefer ~1 MiB f32 activation blocks (HBM streaming saturates around
    0.5-4 MiB and keeps in+out double-buffering plus ~6-10x of in-kernel
    intermediates well under the scoped-VMEM limits of every generation),
    with >=2 grid steps (ideally an even count) so both v7x TensorCores
    receive work under dimension_semantics=("parallel",).
    """
    row_bytes = L * C * 4                      # one batch element, f32
    ideal = max(1, min(B, target_block_bytes // max(row_bytes, 1)))
    divisors = [d for d in range(1, B + 1) if B % d == 0]

    def score(d):
        steps = B // d
        return (0 if steps >= 2 else 1,        # prefer >=2 grid steps (megacore)
                0 if steps % 2 == 0 else 1,    # prefer an even number of steps
                abs(d - ideal))                # prefer ~target-sized blocks

    return min(divisors, key=score)


def residual_stack_pallas(x_nlc, w3, w1, *, batch_block=None):
    """x_nlc: (B, L, C) f32. w3: (layers, 3, C, R). w1: (layers, R, C)."""
    B, L, C = x_nlc.shape
    num_layers, taps, c_in, R = w3.shape
    assert taps == 3 and c_in == C and w1.shape == (num_layers, R, C)

    # N-side fusion: taps go onto the output (lane) axis -> (layers, C, 3*R)
    # with layout [W_0 | W_1 | W_2]; cast to bf16 for the MXU.
    w3_fused = jnp.transpose(w3, (0, 2, 1, 3)).reshape(num_layers, C, 3 * R)
    w3_fused = w3_fused.astype(jnp.bfloat16)
    w1_b = w1.astype(jnp.bfloat16)

    if batch_block is None:
        batch_block = _pick_batch_block(B, L, C)
    assert B % batch_block == 0
    num_steps = B // batch_block

    # Scheduling hint: this kernel is HBM-bandwidth bound.
    flops = 2 * num_layers * B * L * (3 * C * R + R * C)
    bytes_accessed = 2 * B * L * C * 4 + num_layers * (3 * C * R + R * C) * 2

    kernel = functools.partial(residual_stack_kernel,
                               num_layers=num_layers, res_hiddens=R)
    return pl.pallas_call(
        kernel,
        out_shape=jax.ShapeDtypeStruct((B, L, C), x_nlc.dtype),
        grid_spec=pltpu.PrefetchScalarGridSpec(
            num_scalar_prefetch=0,
            grid=(num_steps,),
            in_specs=[
                pl.BlockSpec((batch_block, L, C), lambda b: (b, 0, 0)),
                # Weights are tiny (< 20 KiB): whole arrays for every grid step.
                pl.BlockSpec(w3_fused.shape, lambda b: (0, 0, 0)),
                pl.BlockSpec(w1_b.shape, lambda b: (0, 0, 0)),
            ],
            out_specs=pl.BlockSpec((batch_block, L, C), lambda b: (b, 0, 0)),
        ),
        compiler_params=pltpu.CompilerParams(
            dimension_semantics=("parallel",),
            vmem_limit_bytes=32 * 1024 * 1024),
        cost_estimate=pl.CostEstimate(flops=flops, transcendentals=0,
                                      bytes_accessed=bytes_accessed),
    )(x_nlc, w3_fused, w1_b)


def residual_stack_reference(x_nlc, w3, w1):
    """Pure-JAX reference of the same math (channels-last), mirroring the
    kernel's mixed precision (bf16 matmul operands, f32 accumulation)."""
    x = x_nlc.astype(jnp.float32)
    L = x.shape[1]
    for layer in range(w3.shape[0]):
        h = jnp.maximum(x, 0.0)
        h_pad = jnp.pad(h, ((0, 0), (1, 1), (0, 0))).astype(jnp.bfloat16)
        w3b = w3[layer].astype(jnp.bfloat16)
        acc = sum(
            jnp.einsum("blc,cr->blr", h_pad[:, k:k + L], w3b[k],
                       preferred_element_type=jnp.float32)
            for k in range(3))
        acc = jnp.maximum(acc, 0.0).astype(jnp.bfloat16)
        y = jnp.einsum("blr,rc->blc", acc, w1[layer].astype(jnp.bfloat16),
                       preferred_element_type=jnp.float32)
        x = x + y
    return jnp.maximum(x, 0.0)


if __name__ == "__main__":
    B, C, L = 2, NUM_HIDDENS, 32          # NCL, mirroring the PyTorch Conv1d input
    R = NUM_RESIDUAL_HIDDENS

    key = jax.random.PRNGKey(0)
    kx, k3, k1 = jax.random.split(key, 3)

    x_ncl = jax.random.normal(kx, (B, C, L), dtype=jnp.float32)
    # Deterministic synthetic weights.
    # PyTorch Conv1d k=3 weight is (R, C, 3); our per-tap layout is (C, R) = W_torch[:, :, k].T
    w3 = jax.random.normal(k3, (NUM_RESIDUAL_LAYERS, 3, C, R), dtype=jnp.float32) * 0.05
    # PyTorch Conv1d k=1 weight is (num_hiddens, R, 1); our layout is (R, C) = W_torch[:, :, 0].T
    w1 = jax.random.normal(k1, (NUM_RESIDUAL_LAYERS, R, C), dtype=jnp.float32) * 0.05

    # NCL -> NLC for the channels-last kernel, back to NCL afterwards.
    x_nlc = jnp.transpose(x_ncl, (0, 2, 1))
    out_nlc = residual_stack_pallas(x_nlc, w3, w1)
    out_ncl = jnp.transpose(out_nlc, (0, 2, 1))
    jax.block_until_ready(out_ncl)

    ref_ncl = jnp.transpose(residual_stack_reference(x_nlc, w3, w1), (0, 2, 1))
    assert out_ncl.shape == (B, C, L)
    assert jnp.allclose(out_ncl, ref_ncl, atol=2e-3, rtol=2e-3)

    print("KERNEL_OK")
</pallas_src>

<mosaic_0001>
module attributes {stable_mosaic.version = 11 : i64} {
  func.func @residual_stack_kernel(%arg0: i32, %arg1: memref<1x32x64xf32, #tpu.memory_space<vmem>>, %arg2: memref<2x64x96xbf16, #tpu.memory_space<vmem>>, %arg3: memref<2x32x64xbf16, #tpu.memory_space<vmem>>, %arg4: memref<1x32x64xf32, #tpu.memory_space<vmem>>) attributes {dimension_semantics = [#tpu.dimension_semantics<parallel>], iteration_bounds = array<i64: 2>, scalar_prefetch = 0 : i64, scratch_operands = 0 : i64, tpu.core_type = #tpu.core_type<tc>, window_params = [{transform_indices = @transform_0, window_bounds = array<i64: 1, 32, 64>}, {pipeline_mode = #tpu.pipeline_mode<synchronous>, transform_indices = @transform_1, window_bounds = array<i64: 2, 64, 96>}, {pipeline_mode = #tpu.pipeline_mode<synchronous>, transform_indices = @transform_2, window_bounds = array<i64: 2, 32, 64>}, {transform_indices = @transform_3, window_bounds = array<i64: 1, 32, 64>}]} {
    %c0 = arith.constant 0 : index
    %c0_0 = arith.constant 0 : index
    %c0_1 = arith.constant 0 : index
    %0 = vector.load %arg1[%c0, %c0_0, %c0_1] : memref<1x32x64xf32, #tpu.memory_space<vmem>>, vector<1x32x64xf32>
    %1 = vector.shape_cast %0 : vector<1x32x64xf32> to vector<32x64xf32>
    %2 = tpu.iota {dimensions = array<i32: 0>} : vector<32x1xi32>
    %c32_i32 = arith.constant 32 : i32
    %c0_i32 = arith.constant 0 : i32
    %3 = arith.cmpi eq, %c32_i32, %c0_i32 : i32
    %c1_i32 = arith.constant 1 : i32
    %4 = arith.select %3, %c1_i32, %c32_i32 : i32
    %5 = vector.broadcast %4 : i32 to vector<32x1xi32>
    %6 = arith.remsi %2, %5 : vector<32x1xi32>
    %c0_i32_2 = arith.constant 0 : i32
    %7 = vector.broadcast %c0_i32_2 : i32 to vector<32x1xi32>
    %8 = arith.cmpi ne, %6, %7 : vector<32x1xi32>
    %c0_i32_3 = arith.constant 0 : i32
    %9 = vector.broadcast %c0_i32_3 : i32 to vector<32x1xi32>
    %10 = arith.cmpi slt, %6, %9 : vector<32x1xi32>
    %c0_i32_4 = arith.constant 0 : i32
    %11 = arith.cmpi slt, %4, %c0_i32_4 : i32
    %12 = vector.broadcast %11 : i1 to vector<32x1xi1>
    %13 = vector.broadcast %12 : vector<32x1xi1> to vector<32x1xi1>
    %14 = arith.xori %10, %13 : vector<32x1xi1>
    %15 = arith.andi %14, %8 : vector<32x1xi1>
    %16 = vector.broadcast %4 : i32 to vector<32x1xi32>
    %17 = arith.addi %6, %16 : vector<32x1xi32>
    %18 = arith.select %15, %17, %6 : vector<32x1xi1>, vector<32x1xi32>
    %c0_i32_5 = arith.constant 0 : i32
    %19 = vector.broadcast %c0_i32_5 : i32 to vector<32x1xi32>
    %20 = arith.cmpi eq, %18, %19 : vector<32x1xi32>
    %c31_i32 = arith.constant 31 : i32
    %21 = vector.broadcast %c31_i32 : i32 to vector<32x1xi32>
    %22 = arith.cmpi eq, %18, %21 : vector<32x1xi32>
    %cst = arith.constant 0.000000e+00 : f32
    %23 = vector.broadcast %cst : f32 to vector<32x64xf32>
    %24 = arith.maximumf %1, %23 : vector<32x64xf32>
    %25 = arith.truncf %24 : vector<32x64xf32> to vector<32x64xbf16>
    %c0_6 = arith.constant 0 : index
    %c0_7 = arith.constant 0 : index
    %c0_8 = arith.constant 0 : index
    %26 = vector.load %arg2[%c0_6, %c0_7, %c0_8] : memref<2x64x96xbf16, #tpu.memory_space<vmem>>, vector<1x64x96xbf16>
    %27 = vector.shape_cast %26 : vector<1x64x96xbf16> to vector<64x96xbf16>
    %cst_9 = arith.constant dense<0.000000e+00> : vector<32x96xf32>
    %28 = tpu.matmul %25, %27, %cst_9 {dimension_numbers = #tpu.dot_dimension_numbers<[1], [0], [0], [1], [0, 0, 1, 1], [], []>} : vector<32x64xbf16>, vector<64x96xbf16>, vector<32x96xf32> -> vector<32x96xf32>
    %29 = vector.extract_strided_slice %28 {offsets = [0, 0], sizes = [32, 32], strides = [1, 1]} : vector<32x96xf32> to vector<32x32xf32>
    %30 = vector.extract_strided_slice %28 {offsets = [0, 32], sizes = [32, 32], strides = [1, 1]} : vector<32x96xf32> to vector<32x32xf32>
    %31 = vector.extract_strided_slice %28 {offsets = [0, 64], sizes = [32, 32], strides = [1, 1]} : vector<32x96xf32> to vector<32x32xf32>
    %c1_i32_10 = arith.constant 1 : i32
    %32 = tpu.dynamic_rotate %29 by %c1_i32_10 dim 0 : vector<32x32xf32>, i32 -> vector<32x32xf32>
    %cst_11 = arith.constant 0.000000e+00 : f32
    %33 = vector.shape_cast %20 : vector<32x1xi1> to vector<32x1xi1>
    %34 = vector.broadcast %33 : vector<32x1xi1> to vector<32x32xi1>
    %35 = vector.broadcast %cst_11 : f32 to vector<32x32xf32>
    %36 = arith.select %34, %35, %32 : vector<32x32xi1>, vector<32x32xf32>
    %37 = arith.addf %36, %30 : vector<32x32xf32>
    %c31_i32_12 = arith.constant 31 : i32
    %38 = tpu.dynamic_rotate %31 by %c31_i32_12 dim 0 : vector<32x32xf32>, i32 -> vector<32x32xf32>
    %cst_13 = arith.constant 0.000000e+00 : f32
    %39 = vector.shape_cast %22 : vector<32x1xi1> to vector<32x1xi1>
    %40 = vector.broadcast %39 : vector<32x1xi1> to vector<32x32xi1>
    %41 = vector.broadcast %cst_13 : f32 to vector<32x32xf32>
    %42 = arith.select %40, %41, %38 : vector<32x32xi1>, vector<32x32xf32>
    %43 = arith.addf %37, %42 : vector<32x32xf32>
    %cst_14 = arith.constant 0.000000e+00 : f32
    %44 = vector.broadcast %cst_14 : f32 to vector<32x32xf32>
    %45 = arith.maximumf %43, %44 : vector<32x32xf32>
    %46 = arith.truncf %45 : vector<32x32xf32> to vector<32x32xbf16>
    %c0_15 = arith.constant 0 : index
    %c0_16 = arith.constant 0 : index
    %c0_17 = arith.constant 0 : index
    %47 = vector.load %arg3[%c0_15, %c0_16, %c0_17] : memref<2x32x64xbf16, #tpu.memory_space<vmem>>, vector<1x32x64xbf16>
    %48 = vector.shape_cast %47 : vector<1x32x64xbf16> to vector<32x64xbf16>
    %cst_18 = arith.constant dense<0.000000e+00> : vector<32x64xf32>
    %49 = tpu.matmul %46, %48, %cst_18 {dimension_numbers = #tpu.dot_dimension_numbers<[1], [0], [0], [1], [0, 0, 1, 1], [], []>} : vector<32x32xbf16>, vector<32x64xbf16>, vector<32x64xf32> -> vector<32x64xf32>
    %50 = arith.addf %1, %49 : vector<32x64xf32>
    %cst_19 = arith.constant 0.000000e+00 : f32
    %51 = vector.broadcast %cst_19 : f32 to vector<32x64xf32>
    %52 = arith.maximumf %50, %51 : vector<32x64xf32>
    %53 = arith.truncf %52 : vector<32x64xf32> to vector<32x64xbf16>
    %c1 = arith.constant 1 : index
    %c0_20 = arith.constant 0 : index
    %c0_21 = arith.constant 0 : index
    %54 = vector.load %arg2[%c1, %c0_20, %c0_21] : memref<2x64x96xbf16, #tpu.memory_space<vmem>>, vector<1x64x96xbf16>
    %55 = vector.shape_cast %54 : vector<1x64x96xbf16> to vector<64x96xbf16>
    %cst_22 = arith.constant dense<0.000000e+00> : vector<32x96xf32>
    %56 = tpu.matmul %53, %55, %cst_22 {dimension_numbers = #tpu.dot_dimension_numbers<[1], [0], [0], [1], [0, 0, 1, 1], [], []>} : vector<32x64xbf16>, vector<64x96xbf16>, vector<32x96xf32> -> vector<32x96xf32>
    %57 = vector.extract_strided_slice %56 {offsets = [0, 0], sizes = [32, 32], strides = [1, 1]} : vector<32x96xf32> to vector<32x32xf32>
    %58 = vector.extract_strided_slice %56 {offsets = [0, 32], sizes = [32, 32], strides = [1, 1]} : vector<32x96xf32> to vector<32x32xf32>
    %59 = vector.extract_strided_slice %56 {offsets = [0, 64], sizes = [32, 32], strides = [1, 1]} : vector<32x96xf32> to vector<32x32xf32>
    %c1_i32_23 = arith.constant 1 : i32
    %60 = tpu.dynamic_rotate %57 by %c1_i32_23 dim 0 : vector<32x32xf32>, i32 -> vector<32x32xf32>
    %cst_24 = arith.constant 0.000000e+00 : f32
    %61 = vector.shape_cast %20 : vector<32x1xi1> to vector<32x1xi1>
    %62 = vector.broadcast %61 : vector<32x1xi1> to vector<32x32xi1>
    %63 = vector.broadcast %cst_24 : f32 to vector<32x32xf32>
    %64 = arith.select %62, %63, %60 : vector<32x32xi1>, vector<32x32xf32>
    %65 = arith.addf %64, %58 : vector<32x32xf32>
    %c31_i32_25 = arith.constant 31 : i32
    %66 = tpu.dynamic_rotate %59 by %c31_i32_25 dim 0 : vector<32x32xf32>, i32 -> vector<32x32xf32>
    %cst_26 = arith.constant 0.000000e+00 : f32
    %67 = vector.shape_cast %22 : vector<32x1xi1> to vector<32x1xi1>
    %68 = vector.broadcast %67 : vector<32x1xi1> to vector<32x32xi1>
    %69 = vector.broadcast %cst_26 : f32 to vector<32x32xf32>
    %70 = arith.select %68, %69, %66 : vector<32x32xi1>, vector<32x32xf32>
    %71 = arith.addf %65, %70 : vector<32x32xf32>
    %cst_27 = arith.constant 0.000000e+00 : f32
    %72 = vector.broadcast %cst_27 : f32 to vector<32x32xf32>
    %73 = arith.maximumf %71, %72 : vector<32x32xf32>
    %74 = arith.truncf %73 : vector<32x32xf32> to vector<32x32xbf16>
    %c1_28 = arith.constant 1 : index
    %c0_29 = arith.constant 0 : index
    %c0_30 = arith.constant 0 : index
    %75 = vector.load %arg3[%c1_28, %c0_29, %c0_30] : memref<2x32x64xbf16, #tpu.memory_space<vmem>>, vector<1x32x64xbf16>
    %76 = vector.shape_cast %75 : vector<1x32x64xbf16> to vector<32x64xbf16>
    %cst_31 = arith.constant dense<0.000000e+00> : vector<32x64xf32>
    %77 = tpu.matmul %74, %76, %cst_31 {dimension_numbers = #tpu.dot_dimension_numbers<[1], [0], [0], [1], [0, 0, 1, 1], [], []>} : vector<32x32xbf16>, vector<32x64xbf16>, vector<32x64xf32> -> vector<32x64xf32>
    %78 = arith.addf %50, %77 : vector<32x64xf32>
    %cst_32 = arith.constant 0.000000e+00 : f32
    %79 = vector.broadcast %cst_32 : f32 to vector<32x64xf32>
    %80 = arith.maximumf %78, %79 : vector<32x64xf32>
    %81 = vector.shape_cast %80 : vector<32x64xf32> to vector<1x32x64xf32>
    %c0_33 = arith.constant 0 : index
    %c0_34 = arith.constant 0 : index
    %c0_35 = arith.constant 0 : index
    %82 = vector.load %arg4[%c0_33, %c0_34, %c0_35] : memref<1x32x64xf32, #tpu.memory_space<vmem>>, vector<1x32x64xf32>
    tpu.vector_store %arg4[%c0_33, %c0_34, %c0_35], %81 {strides = array<i32>} : memref<1x32x64xf32, #tpu.memory_space<vmem>>, vector<1x32x64xf32>,
    return
  }
  func.func @transform_0(%arg0: i32) -> (i32, i32, i32) {
    %c0_i32 = arith.constant 0 : i32
    %c0_i32_0 = arith.constant 0 : i32
    %c0_i32_1 = arith.constant 0 : i32
    return %arg0, %c0_i32, %c0_i32_0 : i32, i32, i32
  }
  func.func @transform_1(%arg0: i32) -> (i32, i32, i32) {
    %c0_i32 = arith.constant 0 : i32
    %c0_i32_0 = arith.constant 0 : i32
    %c0_i32_1 = arith.constant 0 : i32
    %c0_i32_2 = arith.constant 0 : i32
    return %c0_i32, %c0_i32_0, %c0_i32_1 : i32, i32, i32
  }
  func.func @transform_2(%arg0: i32) -> (i32, i32, i32) {
    %c0_i32 = arith.constant 0 : i32
    %c0_i32_0 = arith.constant 0 : i32
    %c0_i32_1 = arith.constant 0 : i32
    %c0_i32_2 = arith.constant 0 : i32
    return %c0_i32, %c0_i32_0, %c0_i32_1 : i32, i32, i32
  }
  func.func @transform_3(%arg0: i32) -> (i32, i32, i32) {
    %c0_i32 = arith.constant 0 : i32
    %c0_i32_0 = arith.constant 0 : i32
    %c0_i32_1 = arith.constant 0 : i32
    return %arg0, %c0_i32, %c0_i32_0 : i32, i32, i32
  }
}

</mosaic_0001>

<llo_original>
// kernel: tpu_custom_call.1
$region0: #{tpu_custom_call.1}
  #allocation0 [shape = 'u32[]', space=smem, size = 0x4, offset = 0x4, fixed_abs, tag = 'smem constant byte address 0x4 - core index']
  #allocation1 [shape = 'u32[144,128]{1,0:T(1,128)}', space=vmem, size = 0x12000, scoped, tag = 'internal scratch']
  %s0 = inlined_call_operand.hbm [shape: f32[2,32,64], index: 0, kind: input, shape index: {}]
  %s1 = inlined_call_operand.hbm [shape: bf16[2,64,96], index: 1, kind: input, shape index: {}]
  %s2 = inlined_call_operand.hbm [shape: bf16[2,32,64], index: 2, kind: input, shape index: {}]
  %s3 = inlined_call_operand.hbm [shape: f32[2,32,64], index: 3, kind: output, shape index: {}]
  %s4 = sld [smem:[#allocation0]]
  $region57: #{tpu_custom_call.1} parent=0
    _
  %s6 = ssub.s32 1, %s4
  %s7 = scalar_select 0, %s6, %s4
  $region1: #{tpu_custom_call.1} parent=0
    #allocation2 [shape = 'u8[32768]{0}', space=vmem, size = 0x8000, scoped, tag = 'input window, operand 0']
    #allocation3 [shape = 's32[2]{0}', space=sflag, size = 0x8, scoped, tag = 'scoped memory for tpu_custom_call.1']
    #allocation4 [shape = 's32[2]{0}', space=sflag, size = 0x8, scoped, tag = 'scoped memory for tpu_custom_call.1']
    #allocation5 [shape = 'u8[32768]{0}', space=vmem, size = 0x8000, scoped, tag = 'input window, operand 1, single buffered']
    #allocation6 [shape = 's32[1]{0}', space=sflag, size = 0x4, scoped, tag = 'scoped memory for tpu_custom_call.1']
    #allocation7 [shape = 'u8[16384]{0}', space=vmem, size = 0x4000, scoped, tag = 'input window, operand 2, single buffered']
    #allocation8 [shape = 'u8[32768]{0}', space=vmem, size = 0x8000, scoped, tag = 'output window, operand 0']
    %8 = vsyncpa [#allocation3], 0
    %s9 = scalar_lea.sflag [#allocation3], 1
    %10 = vsyncpa %s9, 0
    %11 = vsyncpa [#allocation6], 0
    %12 = vsyncpa [#allocation4], 0
    %s13 = scalar_lea.sflag [#allocation4], 1
    %14 = vsyncpa %s13, 0
    loop: start=0, step=1, limit=4
    $region2: #{tpu_custom_call.1} parent=1 // loop_pre_header
      _
    $region3: #{tpu_custom_call.1} parent=1 // loop_header
      %s16 = sphi 0, %s20
      %p17 = scmp.ge.s32.totalorder %s16, 4
      %s26 = sphi 0, %s28
      %s29 = sphi 0, %s26
      %s30 = sphi 0, %s29
      %s46 = sphi 0, %s30
      %s50 = sphi 0, %s50
      %s52 = sphi 0, %s50
      %s53 = sphi 0, %s52
      %s67 = sphi 0, %s53
      %s71 = sphi 0, %s71
      %s73 = sphi 0, %s71
      %s74 = sphi 0, %s73
      %s88 = sphi 0, %s74
      %s94 = sphi 0, %s96
      %s97 = sphi 0, %s94
      %s98 = sphi 0, %s97
      %s114 = sphi 0, %s98
    $region4: #{tpu_custom_call.1} parent=1 // loop_header_branch
      %19 = sbr.rel (%p17) target = $region8
    $region5: #{tpu_custom_call.1} parent=1 // loop_body
      %s21 = ssub.s32 %s16, 1
      %s22 = ssub.s32 %s16, 2
      %s23 = sadd.s32 %s16, 1
      %s24 = ssub.s32 %s16, %s23
      %p25 = scmp.eq.s32.totalorder %s24, 0
      %s27 = sadd.s32 %s26, 1
      %s28 = scalar_select %p25, %s26, %s27
      %p31 = pneg %p25
      %p32 = scmp.eq.s32.totalorder %s16, 1
      %p33 = por %p31, %p32
      %p34 = scmp.ne.s32.totalorder %s26, %s29
      %p35 = scmp.eq.s32.totalorder %s16, 0
      %p36 = por %p34, %p35
      %p37 = scmp.ne.s32.totalorder %s26, %s29
      %p38 = scmp.eq.s32.totalorder %s21, 1
      %p39 = por %p37, %p38
      %p40 = scmp.ne.s32.totalorder %s29, %s30
      %p41 = scmp.eq.s32.totalorder %s21, 0
      %p42 = por %p40, %p41
      %p43 = scmp.ne.s32.totalorder %s29, %s30
      %p44 = scmp.eq.s32.totalorder %s22, 1
      %p45 = por %p43, %p44
      %p47 = scmp.ne.s32.totalorder %s30, %s46
      %p48 = scmp.eq.s32.totalorder %s22, 0
      %p49 = por %p47, %p48
      %s51 = sadd.s32 %s50, 1
      %p54 = scmp.eq.s32.totalorder %s16, 1
      %p55 = scmp.ne.s32.totalorder %s50, %s52
      %p56 = scmp.eq.s32.totalorder %s16, 0
      %p57 = por %p55, %p56
      %p58 = scmp.ne.s32.totalorder %s50, %s52
      %p59 = scmp.eq.s32.totalorder %s21, 1
      %p60 = por %p58, %p59
      %p61 = scmp.ne.s32.totalorder %s52, %s53
      %p62 = scmp.eq.s32.totalorder %s21, 0
      %p63 = por %p61, %p62
      %p64 = scmp.ne.s32.totalorder %s52, %s53
      %p65 = scmp.eq.s32.totalorder %s22, 1
      %p66 = por %p64, %p65
      %p68 = scmp.ne.s32.totalorder %s53, %s67
      %p69 = scmp.eq.s32.totalorder %s22, 0
      %p70 = por %p68, %p69
      %s72 = sadd.s32 %s71, 1
      %p75 = scmp.eq.s32.totalorder %s16, 1
      %p76 = scmp.ne.s32.totalorder %s71, %s73
      %p77 = scmp.eq.s32.totalorder %s16, 0
      %p78 = por %p76, %p77
      %p79 = scmp.ne.s32.totalorder %s71, %s73
      %p80 = scmp.eq.s32.totalorder %s21, 1
      %p81 = por %p79, %p80
      %p82 = scmp.ne.s32.totalorder %s73, %s74
      %p83 = scmp.eq.s32.totalorder %s21, 0
      %p84 = por %p82, %p83
      %p85 = scmp.ne.s32.totalorder %s73, %s74
      %p86 = scmp.eq.s32.totalorder %s22, 1
      %p87 = por %p85, %p86
      %p89 = scmp.ne.s32.totalorder %s74, %s88
      %p90 = scmp.eq.s32.totalorder %s22, 0
      %p91 = por %p89, %p90
      %s92 = ssub.s32 %s16, %s23
      %p93 = scmp.eq.s32.totalorder %s92, 0
      %s95 = sadd.s32 %s94, 1
      %s96 = scalar_select %p93, %s94, %s95
      %p99 = pneg %p93
      %p100 = scmp.eq.s32.totalorder %s16, 1
      %p101 = por %p99, %p100
      %p102 = scmp.ne.s32.totalorder %s94, %s97
      %p103 = scmp.eq.s32.totalorder %s16, 0
      %p104 = por %p102, %p103
      %p105 = scmp.ne.s32.totalorder %s94, %s97
      %p106 = scmp.eq.s32.totalorder %s21, 1
      %p107 = por %p105, %p106
      %p108 = scmp.ne.s32.totalorder %s97, %s98
      %p109 = scmp.eq.s32.totalorder %s21, 0
      %p110 = por %p108, %p109
      %p111 = scmp.ne.s32.totalorder %s97, %s98
      %p112 = scmp.eq.s32.totalorder %s22, 1
      %p113 = por %p111, %p112
      %p115 = scmp.ne.s32.totalorder %s98, %s114
      %p116 = scmp.eq.s32.totalorder %s22, 0
      %p117 = por %p115, %p116
      %p118 = scmp.le.s32.totalorder 1, %s16
      %p119 = scmp.lt.s32.totalorder %s16, 3
      %p120 = pnand %p118, %p119
      %p121 = pneg %p120
      // Predicated region
      $region9: #{tpu_custom_call.1} parent=5 // pred_check
        _
      $region10: #{tpu_custom_call.1} parent=5 // pred_check_branch
        %123 = sbr.rel (%p120) target = $region12
      $region11: #{tpu_custom_call.1} parent=5 // pred_region
        %s124 = ssub.s32 %s16, 1
        // Predicated region
        $region13: #{tpu_custom_call.1} parent=11 // pred_check
          %p125 = pneg %p63
        $region14: #{tpu_custom_call.1} parent=11 // pred_check_branch
          %127 = sbr.rel (%p125) target = $region16
        $region15: #{tpu_custom_call.1} parent=11 // pred_region
          %s129 = ssub.s32 1024, 1024
          %130 = vsyncadd [#allocation6], %s129
          %s131 = sshll.u32 [#allocation5], 4
          %s132 = int_to_ptr.vmem [resolvable:$true] %s131
          %137 = dma.hbm_to_vmem [thread:$0]  %s1, 1024, %s132, [#allocation6], 64, 64, 4
        $region16: #{tpu_custom_call.1} parent=11 // pred_fallthru
          _
        // Predicated region
        $region17: #{tpu_custom_call.1} parent=11 // pred_check
          %p138 = pneg %p84
        $region18: #{tpu_custom_call.1} parent=11 // pred_check_branch
          %140 = sbr.rel (%p138) target = $region20
        $region19: #{tpu_custom_call.1} parent=11 // pred_region
          %s142 = ssub.s32 512, 512
          %143 = vsyncadd [#allocation6], %s142
          %s144 = sshll.u32 [#allocation7], 4
          %s145 = int_to_ptr.vmem [resolvable:$true] %s144
          %150 = dma.hbm_to_vmem [thread:$0]  %s2, 512, %s145, [#allocation6], 64, 64, 4
        $region20: #{tpu_custom_call.1} parent=11 // pred_fallthru
          _
      $region12: #{tpu_custom_call.1} parent=5 // pred_fallthru
        _
      %p151 = scmp.lt.s32.totalorder %s16, 2
      // Predicated region
      $region21: #{tpu_custom_call.1} parent=5 // pred_check
        %p152 = pneg %p151
      $region22: #{tpu_custom_call.1} parent=5 // pred_check_branch
        %154 = sbr.rel (%p152) target = $region24
      $region23: #{tpu_custom_call.1} parent=5 // pred_region
        // Predicated region
        $region25: #{tpu_custom_call.1} parent=23 // pred_check
          %p155 = pneg %p36
        $region26: #{tpu_custom_call.1} parent=23 // pred_check_branch
          %157 = sbr.rel (%p155) target = $region28
        $region27: #{tpu_custom_call.1} parent=23 // pred_region
          %s158 = sand.u32 %s26, 1
          %s159 = scalar_lea.sflag [#allocation3], %s158
          %s160 = sand.u32 %s26, 1
          %s161 = smul.addr %s160, 32
          %s162 = scalar_lea.vmem [#allocation2], %s161
          %s164 = ssub.s32 512, 512
          %165 = vsyncadd %s159, %s164
          %s166 = smul.addr %s16, 4
          %s167 = smul.addr %s166, 128
          %s168 = scalar_lea.hbm %s0, %s167
          %s169 = sshll.u32 %s162, 4
          %s170 = int_to_ptr.vmem [resolvable:$true] %s169
          %175 = dma.hbm_to_vmem [thread:$0]  %s168, 512, %s170, %s159, 128, 128, 8
        $region28: #{tpu_custom_call.1} parent=23 // pred_fallthru
          _
      $region24: #{tpu_custom_call.1} parent=5 // pred_fallthru
        _
      %p176 = scmp.le.s32.totalorder 1, %s16
      %p177 = scmp.lt.s32.totalorder %s16, 3
      %p178 = pnand %p176, %p177
      %p179 = pneg %p178
      // Predicated region
      $region29: #{tpu_custom_call.1} parent=5 // pred_check
        _
      $region30: #{tpu_custom_call.1} parent=5 // pred_check_branch
        %181 = sbr.rel (%p178) target = $region32
      $region31: #{tpu_custom_call.1} parent=5 // pred_region
        %s182 = ssub.s32 %s16, 1
        %s183 = sand.u32 %s29, 1
        %s184 = scalar_lea.sflag [#allocation3], %s183
        %s185 = sand.u32 %s29, 1
        %s186 = smul.addr %s185, 32
        %s187 = scalar_lea.vmem [#allocation2], %s186
        // Predicated region
        $region33: #{tpu_custom_call.1} parent=31 // pred_check
          %p188 = pneg %p42
        $region34: #{tpu_custom_call.1} parent=31 // pred_check_branch
          %190 = sbr.rel (%p188) target = $region36
        $region35: #{tpu_custom_call.1} parent=31 // pred_region
          %191 = dma.done %s184, 512
        $region36: #{tpu_custom_call.1} parent=31 // pred_fallthru
          _
        // Predicated region
        $region37: #{tpu_custom_call.1} parent=31 // pred_check
          %p192 = pneg %p63
        $region38: #{tpu_custom_call.1} parent=31 // pred_check_branch
          %194 = sbr.rel (%p192) target = $region40
        $region39: #{tpu_custom_call.1} parent=31 // pred_region
          %195 = dma.done [#allocation6], 1024
        $region40: #{tpu_custom_call.1} parent=31 // pred_fallthru
          _
        // Predicated region
        $region41: #{tpu_custom_call.1} parent=31 // pred_check
          %p196 = pneg %p84
        $region42: #{tpu_custom_call.1} parent=31 // pred_check_branch
          %198 = sbr.rel (%p196) target = $region44
        $region43: #{tpu_custom_call.1} parent=31 // pred_region
          %199 = dma.done [#allocation6], 512
        $region44: #{tpu_custom_call.1} parent=31 // pred_fallthru
          _
        %s200 = sand.u32 %s29, 1
        %s201 = scalar_lea.sflag [#allocation3], %s200
        %s202 = sand.u32 %s29, 1
        %s203 = smul.addr %s202, 32
        %s204 = scalar_lea.vmem [#allocation2], %s203
        %p205 = pneg %p42
        %p206 = pneg %p39
        %p207 = pneg %p63
        %p208 = pneg %p60
        %p209 = pneg %p84
        %p210 = pneg %p81
        %p211 = pneg %p110
        %p212 = pneg %p107
        %s213 = sand.u32 %s97, 1
        %s214 = scalar_lea.sflag [#allocation4], %s213
        %s215 = sand.u32 %s97, 1
        %s216 = smul.addr %s215, 32
        %s217 = scalar_lea.vmem [#allocation8], %s216
        %v219 = vld [vmem:[%s187] sm:$0xff]
        %v220 = vld [vmem:[%s187 + $0x8] sm:$0xff]
        %v221 = vld [vmem:[%s187 + $0x10] sm:$0xff]
        %v222 = vld [vmem:[%s187 + $0x18] sm:$0xff]
        %v223 = vlaneseq
        %v224 = vshrl.u32 %v223, 7
        %v225 = vadd.s32 %v224, 8
        %v226 = vadd.s32 %v224, 16
        %v227 = vadd.s32 %v224, 24
        %vm228 = vcmp.lt.s32.totalorder %v224, 0
        %v229 = vsub.s32 0, %v224
        %v230 = vsel %vm228, %v229, %v224
        %v231 = vshrl.u32 %v230, 5
        %v232 = vand.u32 %v230, 31
        %v233 = vsub.s32 0, %v232
        %v234 = vsel %vm228, %v233, %v232
        %vm235 = vcmp.lt.s32.totalorder %v225, 0
        %v236 = vsub.s32 0, %v225
        %v237 = vsel %vm235, %v236, %v225
        %v238 = vshrl.u32 %v237, 5
        %v239 = vand.u32 %v237, 31
        %v240 = vsub.s32 0, %v239
        %v241 = vsel %vm235, %v240, %v239
        %vm242 = vcmp.lt.s32.totalorder %v226, 0
        %v243 = vsub.s32 0, %v226
        %v244 = vsel %vm242, %v243, %v226
        %v245 = vshrl.u32 %v244, 5
        %v246 = vand.u32 %v244, 31
        %v247 = vsub.s32 0, %v246
        %v248 = vsel %vm242, %v247, %v246
        %vm249 = vcmp.lt.s32.totalorder %v227, 0
        %v250 = vsub.s32 0, %v227
        %v251 = vsel %vm249, %v250, %v227
        %v252 = vshrl.u32 %v251, 5
        %v253 = vand.u32 %v251, 31
        %v254 = vsub.s32 0, %v253
        %v255 = vsel %vm249, %v254, %v253
        %vm256 = vcmp.ne.s32.totalorder %v234, 0
        %vm257 = vcmp.ne.s32.totalorder %v241, 0
        %vm258 = vcmp.ne.s32.totalorder %v248, 0
        %vm259 = vcmp.ne.s32.totalorder %v255, 0
        %vm260 = vcmp.lt.s32.totalorder %v234, 0
        %vm261 = vcmp.lt.s32.totalorder %v241, 0
        %vm262 = vcmp.lt.s32.totalorder %v248, 0
        %vm263 = vcmp.lt.s32.totalorder %v255, 0
        %vm264 = vmand %vm260, %vm256
        %vm265 = vmand %vm261, %vm257
        %vm266 = vmand %vm262, %vm258
        %vm267 = vmand %vm263, %vm259
        %v268 = vadd.s32 %v234, 32
        %v269 = vadd.s32 %v241, 32
        %v270 = vadd.s32 %v248, 32
        %v271 = vadd.s32 %v255, 32
        %v272 = vsel %vm264, %v268, %v234
        %v273 = vsel %vm265, %v269, %v241
        %v274 = vsel %vm266, %v270, %v248
        %v275 = vsel %vm267, %v271, %v255
        %vm276 = vcmp.eq.s32.totalorder %v272, 0
        %vm277 = vcmp.eq.s32.totalorder %v273, 0
        %vm278 = vcmp.eq.s32.totalorder %v274, 0
        %vm279 = vcmp.eq.s32.totalorder %v275, 0
        %vm280 = vcmp.eq.s32.totalorder %v272, 31
        %vm281 = vcmp.eq.s32.totalorder %v273, 31
        %vm282 = vcmp.eq.s32.totalorder %v274, 31
        %vm283 = vcmp.eq.s32.totalorder %v275, 31
        %v284 = vmax.f32 %v219, 0.0
        %v285 = vmax.f32 %v220, 0.0
        %v286 = vmax.f32 %v221, 0.0
        %v287 = vmax.f32 %v222, 0.0
        %v288 = vpack.c.bf16 %v285, %v284
        %v289 = vpack.c.bf16 %v287, %v286
        %v290 = vld [vmem:[#allocation5] sm:$0xf]
        %v291 = vld [vmem:[#allocation5 + $0x4] sm:$0xf]
        %v292 = vld [vmem:[#allocation5 + $0x8] sm:$0xf]
        %v293 = vld [vmem:[#allocation5 + $0xc] sm:$0xf]
        %v294 = vld [vmem:[#allocation5 + $0x10] sm:$0xf]
        %v295 = vld [vmem:[#allocation5 + $0x14] sm:$0xf]
        %v296 = vld [vmem:[#allocation5 + $0x18] sm:$0xf]
        %v297 = vld [vmem:[#allocation5 + $0x1c] sm:$0xf]
        %v306 = vunpack.c.l.b16 %v290
        %v307 = vunpack.c.l.b16 %v291
        %v308 = vunpack.c.l.b16 %v292
        %v309 = vunpack.c.l.b16 %v293
        %v310 = vunpack.c.l.b16 %v294
        %v311 = vunpack.c.l.b16 %v295
        %v312 = vunpack.c.l.b16 %v296
        %v313 = vunpack.c.l.b16 %v297
        %v314 = vpack.c.b16 %v307, %v306
        %v315 = vpack.c.b16 %v309, %v308
        %v316 = vpack.c.b16 %v311, %v310
        %v317 = vpack.c.b16 %v313, %v312
        %vm322 = vcmask 523264
        %v324 = vsel %vm322, %v288, 0
        %v327 = vsel %vm322, %v289, 0
        %329 = vmatprep.subr.bf16.mxu0 0
        %330 = vmatpush1.bf16.msra.mxu0 0
        %331 = vmatprep.subr.bf16.mxu0 0
        %332 = vmatpush1.bf16.msra.mxu0 0
        %333 = vmatprep.subr.bf16.mxu0 0
        %334 = vmatpush1.bf16.msra.mxu0 0
        %335 = vmatprep.subr.bf16.mxu0 0
        %336 = vmatpush1.bf16.msra.mxu0 0
        %337 = vmatprep.subr.bf16.mxu0 0
        %338 = vmatpush1.bf16.msra.mxu0 %v317
        %339 = vmatprep.subr.bf16.mxu0 0
        %340 = vmatpush1.bf16.msra.mxu0 %v316
        %341 = vmatprep.subr.bf16.mxu0 0
        %342 = vmatpush1.bf16.msra.mxu0 %v315
        %343 = vmatprep.subr.bf16.mxu0 0
        %344 = vmatpush1.bf16.msra.mxu0 %v314
        %345 = vmatprep.subr.bf16.mxu0 0
        %346 = vmatpush2.bf16.msra.mxu0 0
        %347 = vmatprep.subr.bf16.mxu0 0
        %348 = vmatpush2.bf16.msra.mxu0 0
        %349 = vmatprep.subr.bf16.mxu0 0
        %350 = vmatpush2.bf16.msra.mxu0 0
        %351 = vmatprep.subr.bf16.mxu0 0
        %352 = vmatpush2.bf16.msra.mxu0 0
        %353 = vmatprep.subr.bf16.mxu0 0
        %354 = vmatpush2.bf16.msra.mxu0 0
        %355 = vmatprep.subr.bf16.mxu0 0
        %356 = vmatpush2.bf16.msra.mxu0 0
        %357 = vmatprep.subr.bf16.mxu0 0
        %358 = vmatpush2.bf16.msra.mxu0 0
        %359 = vmatprep.subr.bf16.mxu0 0
        %360 = vmatpush2.bf16.msra.mxu0 0
        %361 = vmatprep.mubr.bf16.mxu0 0
        %362 = vmatmul.mubr.bf16.gmra.mxu0 %v324
        %v363 = vpop.f32.mrf.mxu0
        %v364 = vadd.f32 0.0, %v363
        %v365 = vpop.f32.mrf.mxu0
        %v366 = vpop.f32.mrf.mxu0
        %v367 = vadd.f32 0.0, %v366
        %v368 = vpop.f32.mrf.mxu0
        %369 = vmatprep.mubr.bf16.mxu0 0
        %370 = vmatmul.mubr.bf16.gmra.mxu0 %v327
        %v371 = vpop.f32.mrf.mxu0
        %v372 = vadd.f32 0.0, %v371
        %v373 = vpop.f32.mrf.mxu0
        %v374 = vpop.f32.mrf.mxu0
        %v375 = vadd.f32 0.0, %v374
        %v376 = vpop.f32.mrf.mxu0
        %377 = vdwg.mxu0
        %v378 = vrot.slane %v364, 7
        %v379 = vrot.slane %v367, 7
        %v380 = vrot.slane %v372, 7
        %v381 = vrot.slane %v375, 7
        %vm382 = vcmp.lt.s32.totalorder %v224, 1
        %v383 = vsel %vm382, %v380, %v381
        %v384 = vsel %vm382, %v379, %v380
        %v385 = vsel %vm382, %v378, %v379
        %v386 = vsel %vm382, %v381, %v378
        %v387 = vsel %vm276, 1, 0
        %v388 = vsel %vm277, 1, 0
        %v389 = vsel %vm278, 1, 0
        %v390 = vsel %vm279, 1, 0
        %vm391 = vcmp.eq.s32.totalorder %v387, 1
        %vm392 = vcmp.eq.s32.totalorder %v388, 1
        %vm393 = vcmp.eq.s32.totalorder %v389, 1
        %vm394 = vcmp.eq.s32.totalorder %v390, 1
        %v395 = vsel %vm391, 0.0, %v386
        %v396 = vsel %vm392, 0.0, %v385
        %v397 = vsel %vm393, 0.0, %v384
        %v398 = vsel %vm394, 0.0, %v383
        %403 = vrot.lane.b32.xlu0 %v364, 96
        %v404 = vpop.permute.xlu0 %403
        %405 = vrot.lane.b32.xlu0 %v367, 96
        %v406 = vpop.permute.xlu0 %405
        %407 = vrot.lane.b32.xlu0 %v372, 96
        %v408 = vpop.permute.xlu0 %407
        %409 = vrot.lane.b32.xlu0 %v375, 96
        %v410 = vpop.permute.xlu0 %409
        %v415 = vadd.f32 %v395, %v404
        %v416 = vadd.f32 %v396, %v406
        %v417 = vadd.f32 %v397, %v408
        %v418 = vadd.f32 %v398, %v410
        %419 = vrot.lane.b32.xlu0 %v364, 64
        %v420 = vpop.permute.xlu0 %419
        %421 = vrot.lane.b32.xlu0 %v367, 64
        %v422 = vpop.permute.xlu0 %421
        %423 = vrot.lane.b32.xlu0 %v372, 64
        %v424 = vpop.permute.xlu0 %423
        %425 = vrot.lane.b32.xlu0 %v375, 64
        %v426 = vpop.permute.xlu0 %425
        %v431 = vrot.slane %v420, 1
        %v432 = vrot.slane %v422, 1
        %v433 = vrot.slane %v424, 1
        %v434 = vrot.slane %v426, 1
        %vm435 = vcmp.lt.s32.totalorder %v224, 7
        %v436 = vsel %vm435, %v433, %v434
        %v437 = vsel %vm435, %v432, %v433
        %v438 = vsel %vm435, %v431, %v432
        %v439 = vsel %vm435, %v434, %v431
        %v440 = vsel %vm280, 1, 0
        %v441 = vsel %vm281, 1, 0
        %v442 = vsel %vm282, 1, 0
        %v443 = vsel %vm283, 1, 0
        %vm444 = vcmp.eq.s32.totalorder %v440, 1
        %vm445 = vcmp.eq.s32.totalorder %v441, 1
        %vm446 = vcmp.eq.s32.totalorder %v442, 1
        %vm447 = vcmp.eq.s32.totalorder %v443, 1
        %v448 = vsel %vm444, 0.0, %v438
        %v449 = vsel %vm445, 0.0, %v437
        %v450 = vsel %vm446, 0.0, %v436
        %v451 = vsel %vm447, 0.0, %v439
        %v452 = vadd.f32 %v415, %v448
        %v453 = vadd.f32 %v416, %v449
        %v454 = vadd.f32 %v417, %v450
        %v455 = vadd.f32 %v418, %v451
        %v456 = vmax.f32 %v452, 0.0
        %v457 = vmax.f32 %v453, 0.0
        %v458 = vmax.f32 %v454, 0.0
        %v459 = vmax.f32 %v455, 0.0
        %v460 = vpack.c.bf16 %v457, %v456
        %v461 = vpack.c.bf16 %v459, %v458
        %v462 = vld [vmem:[#allocation7] sm:$0xf]
        %v463 = vld [vmem:[#allocation7 + $0x4] sm:$0xf]
        %v464 = vld [vmem:[#allocation7 + $0x8] sm:$0xf]
        %v465 = vld [vmem:[#allocation7 + $0xc] sm:$0xf]
        %v470 = vunpack.c.l.b16 %v462
        %v471 = vunpack.c.l.b16 %v463
        %v472 = vunpack.c.l.b16 %v464
        %v473 = vunpack.c.l.b16 %v465
        %v474 = vpack.c.b16 %v471, %v470
        %v475 = vpack.c.b16 %v473, %v472
        %vm478 = vcmask 261120
        %v480 = vsel %vm478, %v460, 0
        %v483 = vsel %vm478, %v461, 0
        %485 = vmatprep.subr.bf16.mxu0 0
        %486 = vmatpush1.bf16.msra.mxu0 0
        %487 = vmatprep.subr.bf16.mxu0 0
        %488 = vmatpush1.bf16.msra.mxu0 0
        %489 = vmatprep.subr.bf16.mxu0 0
        %490 = vmatpush1.bf16.msra.mxu0 0
        %491 = vmatprep.subr.bf16.mxu0 0
        %492 = vmatpush1.bf16.msra.mxu0 0
        %493 = vmatprep.subr.bf16.mxu0 0
        %494 = vmatpush1.bf16.msra.mxu0 0
        %495 = vmatprep.subr.bf16.mxu0 0
        %496 = vmatpush1.bf16.msra.mxu0 0
        %497 = vmatprep.subr.bf16.mxu0 0
        %498 = vmatpush1.bf16.msra.mxu0 %v475
        %499 = vmatprep.subr.bf16.mxu0 0
        %500 = vmatpush1.bf16.msra.mxu0 %v474
        %501 = vmatprep.subr.bf16.mxu0 0
        %502 = vmatpush2.bf16.msra.mxu0 0
        %503 = vmatprep.subr.bf16.mxu0 0
        %504 = vmatpush2.bf16.msra.mxu0 0
        %505 = vmatprep.subr.bf16.mxu0 0
        %506 = vmatpush2.bf16.msra.mxu0 0
        %507 = vmatprep.subr.bf16.mxu0 0
        %508 = vmatpush2.bf16.msra.mxu0 0
        %509 = vmatprep.subr.bf16.mxu0 0
        %510 = vmatpush2.bf16.msra.mxu0 0
        %511 = vmatprep.subr.bf16.mxu0 0
        %512 = vmatpush2.bf16.msra.mxu0 0
        %513 = vmatprep.subr.bf16.mxu0 0
        %514 = vmatpush2.bf16.msra.mxu0 0
        %515 = vmatprep.subr.bf16.mxu0 0
        %516 = vmatpush2.bf16.msra.mxu0 0
        %517 = vmatprep.mubr.bf16.mxu0 0
        %518 = vmatmul.mubr.bf16.gmra.mxu0 %v480
        %v519 = vpop.f32.mrf.mxu0
        %v520 = vadd.f32 0.0, %v519
        %v521 = vpop.f32.mrf.mxu0
        %v522 = vpop.f32.mrf.mxu0
        %v523 = vadd.f32 0.0, %v522
        %v524 = vpop.f32.mrf.mxu0
        %525 = vmatprep.mubr.bf16.mxu0 0
        %526 = vmatmul.mubr.bf16.gmra.mxu0 %v483
        %v527 = vpop.f32.mrf.mxu0
        %v528 = vadd.f32 0.0, %v527
        %v529 = vpop.f32.mrf.mxu0
        %v530 = vpop.f32.mrf.mxu0
        %v531 = vadd.f32 0.0, %v530
        %v532 = vpop.f32.mrf.mxu0
        %533 = vdwg.mxu0
        %v534 = vadd.f32 %v219, %v520
        %v535 = vadd.f32 %v220, %v523
        %v536 = vadd.f32 %v221, %v528
        %v537 = vadd.f32 %v222, %v531
        %v538 = vmax.f32 %v534, 0.0
        %v539 = vmax.f32 %v535, 0.0
        %v540 = vmax.f32 %v536, 0.0
        %v541 = vmax.f32 %v537, 0.0
        %v542 = vpack.c.bf16 %v539, %v538
        %v543 = vpack.c.bf16 %v541, %v540
        %s544 = scalar_lea.vmem [#allocation5], 32
        %v545 = vld [vmem:[%s544] sm:$0xf]
        %v546 = vld [vmem:[%s544 + $0x4] sm:$0xf]
        %v547 = vld [vmem:[%s544 + $0x8] sm:$0xf]
        %v548 = vld [vmem:[%s544 + $0xc] sm:$0xf]
        %v549 = vld [vmem:[%s544 + $0x10] sm:$0xf]
        %v550 = vld [vmem:[%s544 + $0x14] sm:$0xf]
        %v551 = vld [vmem:[%s544 + $0x18] sm:$0xf]
        %v552 = vld [vmem:[%s544 + $0x1c] sm:$0xf]
        %v561 = vunpack.c.l.b16 %v545
        %v562 = vunpack.c.l.b16 %v546
        %v563 = vunpack.c.l.b16 %v547
        %v564 = vunpack.c.l.b16 %v548
        %v565 = vunpack.c.l.b16 %v549
        %v566 = vunpack.c.l.b16 %v550
        %v567 = vunpack.c.l.b16 %v551
        %v568 = vunpack.c.l.b16 %v552
        %v569 = vpack.c.b16 %v562, %v561
        %v570 = vpack.c.b16 %v564, %v563
        %v571 = vpack.c.b16 %v566, %v565
        %v572 = vpack.c.b16 %v568, %v567
        %v578 = vsel %vm322, %v542, 0
        %v581 = vsel %vm322, %v543, 0
        %583 = vmatprep.subr.bf16.mxu0 0
        %584 = vmatpush1.bf16.msra.mxu0 0
        %585 = vmatprep.subr.bf16.mxu0 0
        %586 = vmatpush1.bf16.msra.mxu0 0
        %587 = vmatprep.subr.bf16.mxu0 0
        %588 = vmatpush1.bf16.msra.mxu0 0
        %589 = vmatprep.subr.bf16.mxu0 0
        %590 = vmatpush1.bf16.msra.mxu0 0
        %591 = vmatprep.subr.bf16.mxu0 0
        %592 = vmatpush1.bf16.msra.mxu0 %v572
        %593 = vmatprep.subr.bf16.mxu0 0
        %594 = vmatpush1.bf16.msra.mxu0 %v571
        %595 = vmatprep.subr.bf16.mxu0 0
        %596 = vmatpush1.bf16.msra.mxu0 %v570
        %597 = vmatprep.subr.bf16.mxu0 0
        %598 = vmatpush1.bf16.msra.mxu0 %v569
        %599 = vmatprep.subr.bf16.mxu0 0
        %600 = vmatpush2.bf16.msra.mxu0 0
        %601 = vmatprep.subr.bf16.mxu0 0
        %602 = vmatpush2.bf16.msra.mxu0 0
        %603 = vmatprep.subr.bf16.mxu0 0
        %604 = vmatpush2.bf16.msra.mxu0 0
        %605 = vmatprep.subr.bf16.mxu0 0
        %606 = vmatpush2.bf16.msra.mxu0 0
        %607 = vmatprep.subr.bf16.mxu0 0
        %608 = vmatpush2.bf16.msra.mxu0 0
        %609 = vmatprep.subr.bf16.mxu0 0
        %610 = vmatpush2.bf16.msra.mxu0 0
        %611 = vmatprep.subr.bf16.mxu0 0
        %612 = vmatpush2.bf16.msra.mxu0 0
        %613 = vmatprep.subr.bf16.mxu0 0
        %614 = vmatpush2.bf16.msra.mxu0 0
        %615 = vmatprep.mubr.bf16.mxu0 0
        %616 = vmatmul.mubr.bf16.gmra.mxu0 %v578
        %v617 = vpop.f32.mrf.mxu0
        %v618 = vadd.f32 0.0, %v617
        %v619 = vpop.f32.mrf.mxu0
        %v620 = vpop.f32.mrf.mxu0
        %v621 = vadd.f32 0.0, %v620
        %v622 = vpop.f32.mrf.mxu0
        %623 = vmatprep.mubr.bf16.mxu0 0
        %624 = vmatmul.mubr.bf16.gmra.mxu0 %v581
        %v625 = vpop.f32.mrf.mxu0
        %v626 = vadd.f32 0.0, %v625
        %v627 = vpop.f32.mrf.mxu0
        %v628 = vpop.f32.mrf.mxu0
        %v629 = vadd.f32 0.0, %v628
        %v630 = vpop.f32.mrf.mxu0
        %631 = vdwg.mxu0
        %v632 = vrot.slane %v618, 7
        %v633 = vrot.slane %v621, 7
        %v634 = vrot.slane %v626, 7
        %v635 = vrot.slane %v629, 7
        %v636 = vsel %vm382, %v634, %v635
        %v637 = vsel %vm382, %v633, %v634
        %v638 = vsel %vm382, %v632, %v633
        %v639 = vsel %vm382, %v635, %v632
        %v640 = vsel %vm391, 0.0, %v639
        %v641 = vsel %vm392, 0.0, %v638
        %v642 = vsel %vm393, 0.0, %v637
        %v643 = vsel %vm394, 0.0, %v636
        %648 = vrot.lane.b32.xlu0 %v618, 96
        %v649 = vpop.permute.xlu0 %648
        %650 = vrot.lane.b32.xlu0 %v621, 96
        %v651 = vpop.permute.xlu0 %650
        %652 = vrot.lane.b32.xlu0 %v626, 96
        %v653 = vpop.permute.xlu0 %652
        %654 = vrot.lane.b32.xlu0 %v629, 96
        %v655 = vpop.permute.xlu0 %654
        %v660 = vadd.f32 %v640, %v649
        %v661 = vadd.f32 %v641, %v651
        %v662 = vadd.f32 %v642, %v653
        %v663 = vadd.f32 %v643, %v655
        %664 = vrot.lane.b32.xlu0 %v618, 64
        %v665 = vpop.permute.xlu0 %664
        %666 = vrot.lane.b32.xlu0 %v621, 64
        %v667 = vpop.permute.xlu0 %666
        %668 = vrot.lane.b32.xlu0 %v626, 64
        %v669 = vpop.permute.xlu0 %668
        %670 = vrot.lane.b32.xlu0 %v629, 64
        %v671 = vpop.permute.xlu0 %670
        %v676 = vrot.slane %v665, 1
        %v677 = vrot.slane %v667, 1
        %v678 = vrot.slane %v669, 1
        %v679 = vrot.slane %v671, 1
        %v680 = vsel %vm435, %v678, %v679
        %v681 = vsel %vm435, %v677, %v678
        %v682 = vsel %vm435, %v676, %v677
        %v683 = vsel %vm435, %v679, %v676
        %v684 = vsel %vm444, 0.0, %v682
        %v685 = vsel %vm445, 0.0, %v681
        %v686 = vsel %vm446, 0.0, %v680
        %v687 = vsel %vm447, 0.0, %v683
        %v688 = vadd.f32 %v660, %v684
        %v689 = vadd.f32 %v661, %v685
        %v690 = vadd.f32 %v662, %v686
        %v691 = vadd.f32 %v663, %v687
        %v692 = vmax.f32 %v688, 0.0
        %v693 = vmax.f32 %v689, 0.0
        %v694 = vmax.f32 %v690, 0.0
        %v695 = vmax.f32 %v691, 0.0
        %v696 = vpack.c.bf16 %v693, %v692
        %v697 = vpack.c.bf16 %v695, %v694
        %s698 = scalar_lea.vmem [#allocation7], 16
        %v699 = vld [vmem:[%s698] sm:$0xf]
        %v700 = vld [vmem:[%s698 + $0x4] sm:$0xf]
        %v701 = vld [vmem:[%s698 + $0x8] sm:$0xf]
        %v702 = vld [vmem:[%s698 + $0xc] sm:$0xf]
        %v707 = vunpack.c.l.b16 %v699
        %v708 = vunpack.c.l.b16 %v700
        %v709 = vunpack.c.l.b16 %v701
        %v710 = vunpack.c.l.b16 %v702
        %v711 = vpack.c.b16 %v708, %v707
        %v712 = vpack.c.b16 %v710, %v709
        %v716 = vsel %vm478, %v696, 0
        %v719 = vsel %vm478, %v697, 0
        %721 = vmatprep.subr.bf16.mxu0 0
        %722 = vmatpush1.bf16.msra.mxu0 0
        %723 = vmatprep.subr.bf16.mxu0 0
        %724 = vmatpush1.bf16.msra.mxu0 0
        %725 = vmatprep.subr.bf16.mxu0 0
        %726 = vmatpush1.bf16.msra.mxu0 0
        %727 = vmatprep.subr.bf16.mxu0 0
        %728 = vmatpush1.bf16.msra.mxu0 0
        %729 = vmatprep.subr.bf16.mxu0 0
        %730 = vmatpush1.bf16.msra.mxu0 0
        %731 = vmatprep.subr.bf16.mxu0 0
        %732 = vmatpush1.bf16.msra.mxu0 0
        %733 = vmatprep.subr.bf16.mxu0 0
        %734 = vmatpush1.bf16.msra.mxu0 %v712
        %735 = vmatprep.subr.bf16.mxu0 0
        %736 = vmatpush1.bf16.msra.mxu0 %v711
        %737 = vmatprep.subr.bf16.mxu0 0
        %738 = vmatpush2.bf16.msra.mxu0 0
        %739 = vmatprep.subr.bf16.mxu0 0
        %740 = vmatpush2.bf16.msra.mxu0 0
        %741 = vmatprep.subr.bf16.mxu0 0
        %742 = vmatpush2.bf16.msra.mxu0 0
        %743 = vmatprep.subr.bf16.mxu0 0
        %744 = vmatpush2.bf16.msra.mxu0 0
        %745 = vmatprep.subr.bf16.mxu0 0
        %746 = vmatpush2.bf16.msra.mxu0 0
        %747 = vmatprep.subr.bf16.mxu0 0
        %748 = vmatpush2.bf16.msra.mxu0 0
        %749 = vmatprep.subr.bf16.mxu0 0
        %750 = vmatpush2.bf16.msra.mxu0 0
        %751 = vmatprep.subr.bf16.mxu0 0
        %752 = vmatpush2.bf16.msra.mxu0 0
        %753 = vmatprep.mubr.bf16.mxu0 0
        %754 = vmatmul.mubr.bf16.gmra.mxu0 %v716
        %v755 = vpop.f32.mrf.mxu0
        %v756 = vadd.f32 0.0, %v755
        %v757 = vpop.f32.mrf.mxu0
        %v758 = vpop.f32.mrf.mxu0
        %v759 = vadd.f32 0.0, %v758
        %v760 = vpop.f32.mrf.mxu0
        %761 = vmatprep.mubr.bf16.mxu0 0
        %762 = vmatmul.mubr.bf16.gmra.mxu0 %v719
        %v763 = vpop.f32.mrf.mxu0
        %v764 = vadd.f32 0.0, %v763
        %v765 = vpop.f32.mrf.mxu0
        %v766 = vpop.f32.mrf.mxu0
        %v767 = vadd.f32 0.0, %v766
        %v768 = vpop.f32.mrf.mxu0
        %769 = vdwg.mxu0
        %v770 = vadd.f32 %v534, %v756
        %v771 = vadd.f32 %v535, %v759
        %v772 = vadd.f32 %v536, %v764
        %v773 = vadd.f32 %v537, %v767
        %v774 = vmax.f32 %v770, 0.0
        %v775 = vmax.f32 %v771, 0.0
        %v776 = vmax.f32 %v772, 0.0
        %v777 = vmax.f32 %v773, 0.0
        %778 = vst.msk [vmem:[%s217] sm:$0xff] %vm322, %v774
        %779 = vst.msk [vmem:[%s217 + $0x8] sm:$0xff] %vm322, %v775
        %780 = vst.msk [vmem:[%s217 + $0x10] sm:$0xff] %vm322, %v776
        %781 = vst.msk [vmem:[%s217 + $0x18] sm:$0xff] %vm322, %v777
        %s782 = sand.u32 %s97, 1
        %s783 = scalar_lea.sflag [#allocation4], %s782
        %s784 = sand.u32 %s97, 1
        %s785 = smul.addr %s784, 32
        %s786 = scalar_lea.vmem [#allocation8], %s785
        // Predicated region
        $region45: #{tpu_custom_call.1} parent=31 // pred_check
          %p787 = pneg %p107
        $region46: #{tpu_custom_call.1} parent=31 // pred_check_branch
          %789 = sbr.rel (%p787) target = $region48
        $region47: #{tpu_custom_call.1} parent=31 // pred_region
          %s791 = ssub.s32 512, 512
          %792 = vsyncadd %s783, %s791
          %s793 = smul.addr %s21, 4
          %s794 = smul.addr %s793, 128
          %s795 = scalar_lea.hbm %s3, %s794
          %s796 = sshll.u32 %s786, 4
          %s797 = int_to_ptr.vmem [resolvable:$true] %s796
          %802 = dma.vmem_to_hbm [thread:$0]  %s797, 512, %s795, %s783, 128, 128, 8
        $region48: #{tpu_custom_call.1} parent=31 // pred_fallthru
          _
      $region32: #{tpu_custom_call.1} parent=5 // pred_fallthru
        _
      %p803 = scmp.le.s32.totalorder 2, %s16
      // Predicated region
      $region49: #{tpu_custom_call.1} parent=5 // pred_check
        %p804 = pneg %p803
      $region50: #{tpu_custom_call.1} parent=5 // pred_check_branch
        %806 = sbr.rel (%p804) target = $region52
      $region51: #{tpu_custom_call.1} parent=5 // pred_region
        %s807 = ssub.s32 %s16, 2
        // Predicated region
        $region53: #{tpu_custom_call.1} parent=51 // pred_check
          %p808 = pneg %p113
        $region54: #{tpu_custom_call.1} parent=51 // pred_check_branch
          %810 = sbr.rel (%p808) target = $region56
        $region55: #{tpu_custom_call.1} parent=51 // pred_region
          %s811 = sand.u32 %s98, 1
          %s812 = scalar_lea.sflag [#allocation4], %s811
          %s813 = sand.u32 %s98, 1
          %s814 = smul.addr %s813, 32
          %s815 = scalar_lea.vmem [#allocation8], %s814
          %816 = dma.done %s812, 512
        $region56: #{tpu_custom_call.1} parent=51 // pred_fallthru
          _
      $region52: #{tpu_custom_call.1} parent=5 // pred_fallthru
        _
    $region6: #{tpu_custom_call.1} parent=1 // loop_footer
      %s20 = sadd.s32 1, %s16
    $region7: #{tpu_custom_call.1} parent=1 // loop_footer_branch
      %15 = sbr.rel target = $region3
    $region8: #{tpu_custom_call.1} parent=1 // loop_exit
      _
    %817 = vsyncpa [#allocation3], 1
    %s818 = scalar_lea.sflag [#allocation3], 1
    %819 = vsyncpa %s818, 1
    %820 = vsyncpa [#allocation6], 1
    %821 = vsyncpa [#allocation4], 1
    %s822 = scalar_lea.sflag [#allocation4], 1
    %823 = vsyncpa %s822, 1

</llo_original>
